<compile_context>
chip_gen: v7x
topology: tpu7x:2x2x1
jax: 0.10.0
libtpu: 0.0.40
codegen_flags: <defaults>
</compile_context>

<pallas_src>
import jax
import jax.numpy as jnp
from jax import lax
from jax.experimental import pallas as pl
from jax.experimental.pallas import tpu as pltpu

LANES = 128          # lane width: pad channel dims to a multiple of this
ROW_TILE = 128       # rows (batch*spatial positions) per grid step
_BN_EPS = 1e-5       # PyTorch BatchNorm2d default


def _round_up(n, m):
    return (n + m - 1) // m * m


def _im2col_3x3(x_nhwc, stride):
    """3x3, padding=1 patch extraction (layout plumbing, runs in XLA).

    Returns ([B*Ho*Wo, 9*C], (Ho, Wo)); feature order is tap-major, channel-minor.
    """
    B, H, W, C = x_nhwc.shape
    Ho = (H - 1) // stride + 1
    Wo = (W - 1) // stride + 1
    xp = jnp.pad(x_nhwc, ((0, 0), (1, 1), (1, 1), (0, 0)))
    taps = []
    for dy in range(3):
        for dx in range(3):
            taps.append(xp[:, dy:dy + stride * (Ho - 1) + 1:stride,
                           dx:dx + stride * (Wo - 1) + 1:stride, :])
    col = jnp.concatenate(taps, axis=-1)          # [B, Ho, Wo, 9*C]
    return col.reshape(B * Ho * Wo, 9 * C), (Ho, Wo)


# ---------------------------------------------------------------------------
# Pallas kernels
# ---------------------------------------------------------------------------
def conv1_bn_relu_kernel(x_ref, w_ref, s_ref, b_ref, o_ref):
    # h = relu(bn1(conv1(x))): bf16 GEMM on the MXU, f32 accumulation,
    # f32 BN+ReLU epilogue, lane-dense bf16 store.
    acc = jnp.dot(x_ref[...], w_ref[...], preferred_element_type=jnp.float32)
    o_ref[...] = jnp.maximum(acc * s_ref[...] + b_ref[...], 0.0).astype(o_ref.dtype)


def conv2_bn_add_relu_kernel(h_ref, w2_ref, s2_ref, b2_ref,
                             xc_ref, ws_ref, ss_ref, bs_ref, o_ref):
    # out = relu(bn2(conv2(h)) + bn_s(conv_s(x))): main GEMM + fused shortcut GEMM.
    main = jnp.dot(h_ref[...], w2_ref[...], preferred_element_type=jnp.float32)
    main = main * s2_ref[...] + b2_ref[...]
    sc = jnp.dot(xc_ref[...], ws_ref[...], preferred_element_type=jnp.float32)
    sc = sc * ss_ref[...] + bs_ref[...]
    o_ref[...] = jnp.maximum(main + sc, 0.0).astype(o_ref.dtype)


# ---------------------------------------------------------------------------
# Forward pass
# ---------------------------------------------------------------------------
def basic_block_forward(x_nchw, params, *, stride=1, eps=_BN_EPS):
    """Eval-mode BasicBlock forward. x_nchw: [B, Cin, H, W] float32 (NCHW)."""
    w1 = params["w1"]                       # [3, 3, Cin, planes]  (HWIO)
    g1, be1, m1, v1 = params["bn1"]
    w2 = params["w2"]                       # [3, 3, planes, planes]
    g2, be2, m2, v2 = params["bn2"]

    B, Cin, H, W = x_nchw.shape
    planes = w1.shape[-1]
    Pp = _round_up(planes, LANES)           # lane-dense padded channel count

    x = jnp.transpose(x_nchw, (0, 2, 3, 1)).astype(jnp.bfloat16)   # NHWC bf16

    # Fold inference-mode BN into per-channel scale/bias (f32), padded to Pp lanes.
    # TODO(synk): training-mode BatchNorm (per-batch statistics + running-stat
    # updates) is not implemented; this is the eval-mode forward.
    def fold_bn(gamma, beta, mean, var):
        s = (gamma / jnp.sqrt(var + eps)).astype(jnp.float32)
        b = (beta - mean * s).astype(jnp.float32)
        sp = jnp.zeros((1, Pp), jnp.float32).at[0, :planes].set(s)
        bp = jnp.zeros((1, Pp), jnp.float32).at[0, :planes].set(b)
        return sp, bp

    s1, b1 = fold_bn(g1, be1, m1, v1)
    s2, b2 = fold_bn(g2, be2, m2, v2)

    # Weights -> im2col GEMM layout, output channels zero-padded to Pp.
    w1_col = jnp.pad(w1.reshape(9 * Cin, planes),
                     ((0, 0), (0, Pp - planes))).astype(jnp.bfloat16)
    w2_full = jnp.zeros((3, 3, Pp, Pp), w2.dtype).at[:, :, :planes, :planes].set(w2)
    w2_col = w2_full.reshape(9 * Pp, Pp).astype(jnp.bfloat16)

    has_proj = (stride != 1) or (Cin != planes)
    if has_proj:
        ws = params["ws"]                   # [1, 1, Cin, planes]
        gs, bes, ms, vs = params["bns"]
        ws_col = jnp.pad(ws.reshape(Cin, planes),
                         ((0, 0), (0, Pp - planes))).astype(jnp.bfloat16)
        ss, bs = fold_bn(gs, bes, ms, vs)
    else:
        # Identity shortcut expressed as an identity 1x1 "conv" (scale 1, bias 0).
        ws_col = jnp.pad(jnp.eye(Cin, dtype=jnp.float32),
                         ((0, 0), (0, Pp - Cin))).astype(jnp.bfloat16)
        ss = jnp.zeros((1, Pp), jnp.float32).at[0, :planes].set(1.0)
        bs = jnp.zeros((1, Pp), jnp.float32)

    # im2col + row padding (layout plumbing; all compute is in the kernels).
    x_col1, (Ho, Wo) = _im2col_3x3(x, stride)       # [N, 9*Cin]
    N = B * Ho * Wo
    Np = _round_up(N, ROW_TILE)
    G = Np // ROW_TILE
    K1 = 9 * Cin
    x_col1 = jnp.pad(x_col1, ((0, Np - N), (0, 0)))
    x_cen = x[:, ::stride, ::stride, :].reshape(N, Cin)
    x_cen = jnp.pad(x_cen, ((0, Np - N), (0, 0)))

    cparams = pltpu.CompilerParams(dimension_semantics=("parallel",),
                                   vmem_limit_bytes=32 * 1024 * 1024)

    # ---- kernel 1: h = relu(bn1(conv1(x))) ----
    h_col = pl.pallas_call(
        conv1_bn_relu_kernel,
        out_shape=jax.ShapeDtypeStruct((Np, Pp), jnp.bfloat16),
        grid=(G,),
        in_specs=[
            pl.BlockSpec((ROW_TILE, K1), lambda i: (i, 0)),   # activation rows streamed
            pl.BlockSpec((K1, Pp), lambda i: (0, 0)),          # weights VMEM-resident
            pl.BlockSpec((1, Pp), lambda i: (0, 0)),
            pl.BlockSpec((1, Pp), lambda i: (0, 0)),
        ],
        out_specs=pl.BlockSpec((ROW_TILE, Pp), lambda i: (i, 0)),
        compiler_params=cparams,
        cost_estimate=pl.CostEstimate(
            flops=2 * Np * K1 * Pp, transcendentals=0,
            bytes_accessed=(Np * K1 + K1 * Pp + Np * Pp) * 2 + 2 * Pp * 4),
    )(x_col1, w1_col, s1, b1)

    # Layout plumbing between the two convs (conv2 is stride-1, padding-1).
    h = h_col[:N].reshape(B, Ho, Wo, Pp)
    h_col2, _ = _im2col_3x3(h, 1)                    # [N, 9*Pp]
    K2 = 9 * Pp
    h_col2 = jnp.pad(h_col2, ((0, Np - N), (0, 0)))

    # ---- kernel 2: out = relu(bn2(conv2(h)) + shortcut(x)) ----
    out_col = pl.pallas_call(
        conv2_bn_add_relu_kernel,
        out_shape=jax.ShapeDtypeStruct((Np, Pp), jnp.float32),
        grid=(G,),
        in_specs=[
            pl.BlockSpec((ROW_TILE, K2), lambda i: (i, 0)),
            pl.BlockSpec((K2, Pp), lambda i: (0, 0)),
            pl.BlockSpec((1, Pp), lambda i: (0, 0)),
            pl.BlockSpec((1, Pp), lambda i: (0, 0)),
            pl.BlockSpec((ROW_TILE, Cin), lambda i: (i, 0)),
            pl.BlockSpec((Cin, Pp), lambda i: (0, 0)),
            pl.BlockSpec((1, Pp), lambda i: (0, 0)),
            pl.BlockSpec((1, Pp), lambda i: (0, 0)),
        ],
        out_specs=pl.BlockSpec((ROW_TILE, Pp), lambda i: (i, 0)),
        compiler_params=cparams,
        cost_estimate=pl.CostEstimate(
            flops=2 * Np * (K2 + Cin) * Pp, transcendentals=0,
            bytes_accessed=(Np * K2 + K2 * Pp + Np * Cin + Cin * Pp) * 2
                           + 4 * Pp * 4 + Np * Pp * 4),
    )(h_col2, w2_col, s2, b2, x_cen, ws_col, ss, bs)

    out = out_col[:N, :planes].reshape(B, Ho, Wo, planes)
    return jnp.transpose(out, (0, 3, 1, 2))          # back to NCHW


# ---------------------------------------------------------------------------
# Pure-JAX reference (no Pallas), same eval-mode BN semantics
# ---------------------------------------------------------------------------
def basic_block_reference(x_nchw, params, *, stride=1, eps=_BN_EPS):
    w1 = params["w1"]; g1, be1, m1, v1 = params["bn1"]
    w2 = params["w2"]; g2, be2, m2, v2 = params["bn2"]
    B, Cin, H, W = x_nchw.shape
    planes = w1.shape[-1]
    x = jnp.transpose(x_nchw, (0, 2, 3, 1)).astype(jnp.bfloat16)

    def conv(inp, w, st, pad):
        return lax.conv_general_dilated(
            inp, w.astype(jnp.bfloat16), window_strides=(st, st), padding=pad,
            dimension_numbers=("NHWC", "HWIO", "NHWC"),
            preferred_element_type=jnp.float32)

    def bn(y, gamma, beta, mean, var):
        return (y - mean) / jnp.sqrt(var + eps) * gamma + beta

    h = jnp.maximum(bn(conv(x, w1, stride, ((1, 1), (1, 1))), g1, be1, m1, v1), 0.0)
    out = bn(conv(h.astype(jnp.bfloat16), w2, 1, ((1, 1), (1, 1))), g2, be2, m2, v2)
    if (stride != 1) or (Cin != planes):
        ws = params["ws"]; gs, bes, ms, vs = params["bns"]
        sc = bn(conv(x, ws, stride, ((0, 0), (0, 0))), gs, bes, ms, vs)
    else:
        sc = x.astype(jnp.float32)
    out = jnp.maximum(out + sc, 0.0)
    return jnp.transpose(out, (0, 3, 1, 2))


if __name__ == "__main__":
    key = jax.random.PRNGKey(0)
    ks = jax.random.split(key, 8)

    B, Cin, H, W = 2, 4, 16, 16
    planes, stride = 8, 1              # Cin != planes -> projection shortcut path

    x = jax.random.normal(ks[0], (B, Cin, H, W), jnp.float32)

    def conv_init(k, kh, kw, cin, cout):
        std = (2.0 / (kh * kw * cin)) ** 0.5
        return std * jax.random.normal(k, (kh, kw, cin, cout), jnp.float32)

    def bn_init(k, c):
        k1, k2, k3, k4 = jax.random.split(k, 4)
        gamma = 1.0 + 0.1 * jax.random.normal(k1, (c,), jnp.float32)
        beta = 0.1 * jax.random.normal(k2, (c,), jnp.float32)
        mean = 0.1 * jax.random.normal(k3, (c,), jnp.float32)
        var = 0.5 + jax.nn.softplus(jax.random.normal(k4, (c,), jnp.float32))
        return gamma, beta, mean, var

    params = {
        "w1": conv_init(ks[1], 3, 3, Cin, planes),
        "bn1": bn_init(ks[2], planes),
        "w2": conv_init(ks[3], 3, 3, planes, planes),
        "bn2": bn_init(ks[4], planes),
        "ws": conv_init(ks[5], 1, 1, Cin, planes),   # 1x1 projection shortcut
        "bns": bn_init(ks[6], planes),
    }

    out = basic_block_forward(x, params, stride=stride)
    out = jax.block_until_ready(out)

    ref = basic_block_reference(x, params, stride=stride)
    assert out.shape == (B, planes, H, W), out.shape
    max_err = float(jnp.max(jnp.abs(out - ref)))
    assert jnp.allclose(out, ref, atol=3e-2, rtol=3e-2), f"max abs err = {max_err}"

    print("KERNEL_OK")
</pallas_src>

<mosaic_0001>
module attributes {stable_mosaic.version = 11 : i64} {
  func.func @conv1_bn_relu_kernel(%arg0: i32, %arg1: memref<128x36xbf16, #tpu.memory_space<vmem>>, %arg2: memref<36x128xbf16, #tpu.memory_space<vmem>>, %arg3: memref<1x128xf32, #tpu.memory_space<vmem>>, %arg4: memref<1x128xf32, #tpu.memory_space<vmem>>, %arg5: memref<128x128xbf16, #tpu.memory_space<vmem>>) attributes {dimension_semantics = [#tpu.dimension_semantics<parallel>], iteration_bounds = array<i64: 4>, scalar_prefetch = 0 : i64, scratch_operands = 0 : i64, tpu.core_type = #tpu.core_type<tc>, window_params = [{transform_indices = @transform_0, window_bounds = array<i64: 128, 36>}, {pipeline_mode = #tpu.pipeline_mode<synchronous>, transform_indices = @transform_1, window_bounds = array<i64: 36, 128>}, {pipeline_mode = #tpu.pipeline_mode<synchronous>, transform_indices = @transform_2, window_bounds = array<i64: 1, 128>}, {pipeline_mode = #tpu.pipeline_mode<synchronous>, transform_indices = @transform_3, window_bounds = array<i64: 1, 128>}, {transform_indices = @transform_4, window_bounds = array<i64: 128, 128>}]} {
    %c0 = arith.constant 0 : index
    %c0_0 = arith.constant 0 : index
    %0 = vector.load %arg1[%c0, %c0_0] : memref<128x36xbf16, #tpu.memory_space<vmem>>, vector<128x36xbf16>
    %c0_1 = arith.constant 0 : index
    %c0_2 = arith.constant 0 : index
    %1 = vector.load %arg2[%c0_1, %c0_2] : memref<36x128xbf16, #tpu.memory_space<vmem>>, vector<36x128xbf16>
    %cst = arith.constant dense<0.000000e+00> : vector<128x128xf32>
    %2 = tpu.matmul %0, %1, %cst {dimension_numbers = #tpu.dot_dimension_numbers<[1], [0], [0], [1], [0, 0, 1, 1], [], []>} : vector<128x36xbf16>, vector<36x128xbf16>, vector<128x128xf32> -> vector<128x128xf32>
    %c0_3 = arith.constant 0 : index
    %c0_4 = arith.constant 0 : index
    %3 = vector.load %arg3[%c0_3, %c0_4] : memref<1x128xf32, #tpu.memory_space<vmem>>, vector<1x128xf32>
    %4 = vector.broadcast %3 : vector<1x128xf32> to vector<128x128xf32>
    %5 = arith.mulf %2, %4 : vector<128x128xf32>
    %c0_5 = arith.constant 0 : index
    %c0_6 = arith.constant 0 : index
    %6 = vector.load %arg4[%c0_5, %c0_6] : memref<1x128xf32, #tpu.memory_space<vmem>>, vector<1x128xf32>
    %7 = vector.broadcast %6 : vector<1x128xf32> to vector<128x128xf32>
    %8 = arith.addf %5, %7 : vector<128x128xf32>
    %cst_7 = arith.constant 0.000000e+00 : f32
    %9 = vector.broadcast %cst_7 : f32 to vector<128x128xf32>
    %10 = arith.maximumf %8, %9 : vector<128x128xf32>
    %11 = arith.truncf %10 : vector<128x128xf32> to vector<128x128xbf16>
    %c0_8 = arith.constant 0 : index
    %c0_9 = arith.constant 0 : index
    %12 = vector.load %arg5[%c0_8, %c0_9] : memref<128x128xbf16, #tpu.memory_space<vmem>>, vector<128x128xbf16>
    tpu.vector_store %arg5[%c0_8, %c0_9], %11 {strides = array<i32>} : memref<128x128xbf16, #tpu.memory_space<vmem>>, vector<128x128xbf16>,
    return
  }
  func.func @transform_0(%arg0: i32) -> (i32, i32) {
    %c0_i32 = arith.constant 0 : i32
    %c0_i32_0 = arith.constant 0 : i32
    return %arg0, %c0_i32 : i32, i32
  }
  func.func @transform_1(%arg0: i32) -> (i32, i32) {
    %c0_i32 = arith.constant 0 : i32
    %c0_i32_0 = arith.constant 0 : i32
    %c0_i32_1 = arith.constant 0 : i32
    return %c0_i32, %c0_i32_0 : i32, i32
  }
  func.func @transform_2(%arg0: i32) -> (i32, i32) {
    %c0_i32 = arith.constant 0 : i32
    %c0_i32_0 = arith.constant 0 : i32
    %c0_i32_1 = arith.constant 0 : i32
    return %c0_i32, %c0_i32_0 : i32, i32
  }
  func.func @transform_3(%arg0: i32) -> (i32, i32) {
    %c0_i32 = arith.constant 0 : i32
    %c0_i32_0 = arith.constant 0 : i32
    %c0_i32_1 = arith.constant 0 : i32
    return %c0_i32, %c0_i32_0 : i32, i32
  }
  func.func @transform_4(%arg0: i32) -> (i32, i32) {
    %c0_i32 = arith.constant 0 : i32
    %c0_i32_0 = arith.constant 0 : i32
    return %arg0, %c0_i32 : i32, i32
  }
}

</mosaic_0001>

<llo_original>
// kernel: tpu_custom_call.1
$region0: #{tpu_custom_call.1}
  #allocation0 [shape = 'u32[]', space=smem, size = 0x4, offset = 0x4, fixed_abs, tag = 'smem constant byte address 0x4 - core index']
  #allocation1 [shape = 'u32[144,128]{1,0:T(1,128)}', space=vmem, size = 0x12000, scoped, tag = 'internal scratch']
  %s0 = inlined_call_operand.vmem [shape: bf16[512,36], index: 0, kind: input, shape index: {}]
  %s1 = inlined_call_operand.vmem [shape: bf16[36,128], index: 1, kind: input, shape index: {}]
  %s2 = inlined_call_operand.vmem [shape: f32[1,128], index: 2, kind: input, shape index: {}]
  %s3 = inlined_call_operand.vmem [shape: f32[1,128], index: 3, kind: input, shape index: {}]
  %s4 = inlined_call_operand.hbm [shape: bf16[512,128], index: 4, kind: output, shape index: {}]
  %s5 = sld [smem:[#allocation0]]
  $region49: #{tpu_custom_call.1} parent=0
    _
  %s7 = ssub.s32 1, %s5
  %s8 = scalar_select 0, %s7, %s5
  $region1: #{tpu_custom_call.1} parent=0
    #allocation2 [shape = 'u8[65536]{0}', space=vmem, size = 0x10000, scoped, tag = 'output window, operand 0']
    #allocation3 [shape = 's32[2]{0}', space=sflag, size = 0x8, scoped, tag = 'scoped memory for tpu_custom_call.1']
    %9 = vsyncpa [#allocation3], 0
    %s10 = scalar_lea.sflag [#allocation3], 1
    %11 = vsyncpa %s10, 0
    loop: start=0, step=1, limit=6
    $region2: #{tpu_custom_call.1} parent=1 // loop_pre_header
      _
    $region3: #{tpu_custom_call.1} parent=1 // loop_header
      %s13 = sphi 0, %s17
      %p14 = scmp.ge.s32.totalorder %s13, 6
      %s23 = sphi 0, %s25
      %s26 = sphi 0, %s23
      %s27 = sphi 0, %s26
      %s43 = sphi 0, %s27
      %s47 = sphi 0, %s47
      %s49 = sphi 0, %s47
      %s50 = sphi 0, %s49
      %s64 = sphi 0, %s50
      %s68 = sphi 0, %s68
      %s70 = sphi 0, %s68
      %s71 = sphi 0, %s70
      %s85 = sphi 0, %s71
      %s89 = sphi 0, %s89
      %s91 = sphi 0, %s89
      %s92 = sphi 0, %s91
      %s106 = sphi 0, %s92
      %s112 = sphi 0, %s114
      %s115 = sphi 0, %s112
      %s116 = sphi 0, %s115
      %s132 = sphi 0, %s116
    $region4: #{tpu_custom_call.1} parent=1 // loop_header_branch
      %16 = sbr.rel (%p14) target = $region8
    $region5: #{tpu_custom_call.1} parent=1 // loop_body
      %s18 = ssub.s32 %s13, 1
      %s19 = ssub.s32 %s13, 2
      %s20 = sadd.s32 %s13, 1
      %s21 = ssub.s32 %s13, %s20
      %p22 = scmp.eq.s32.totalorder %s21, 0
      %s24 = sadd.s32 %s23, 1
      %s25 = scalar_select %p22, %s23, %s24
      %p28 = pneg %p22
      %p29 = scmp.eq.s32.totalorder %s13, 3
      %p30 = por %p28, %p29
      %p31 = scmp.ne.s32.totalorder %s23, %s26
      %p32 = scmp.eq.s32.totalorder %s13, 0
      %p33 = por %p31, %p32
      %p34 = scmp.ne.s32.totalorder %s23, %s26
      %p35 = scmp.eq.s32.totalorder %s18, 3
      %p36 = por %p34, %p35
      %p37 = scmp.ne.s32.totalorder %s26, %s27
      %p38 = scmp.eq.s32.totalorder %s18, 0
      %p39 = por %p37, %p38
      %p40 = scmp.ne.s32.totalorder %s26, %s27
      %p41 = scmp.eq.s32.totalorder %s19, 3
      %p42 = por %p40, %p41
      %p44 = scmp.ne.s32.totalorder %s27, %s43
      %p45 = scmp.eq.s32.totalorder %s19, 0
      %p46 = por %p44, %p45
      %s48 = sadd.s32 %s47, 1
      %p51 = scmp.eq.s32.totalorder %s13, 3
      %p52 = scmp.ne.s32.totalorder %s47, %s49
      %p53 = scmp.eq.s32.totalorder %s13, 0
      %p54 = por %p52, %p53
      %p55 = scmp.ne.s32.totalorder %s47, %s49
      %p56 = scmp.eq.s32.totalorder %s18, 3
      %p57 = por %p55, %p56
      %p58 = scmp.ne.s32.totalorder %s49, %s50
      %p59 = scmp.eq.s32.totalorder %s18, 0
      %p60 = por %p58, %p59
      %p61 = scmp.ne.s32.totalorder %s49, %s50
      %p62 = scmp.eq.s32.totalorder %s19, 3
      %p63 = por %p61, %p62
      %p65 = scmp.ne.s32.totalorder %s50, %s64
      %p66 = scmp.eq.s32.totalorder %s19, 0
      %p67 = por %p65, %p66
      %s69 = sadd.s32 %s68, 1
      %p72 = scmp.eq.s32.totalorder %s13, 3
      %p73 = scmp.ne.s32.totalorder %s68, %s70
      %p74 = scmp.eq.s32.totalorder %s13, 0
      %p75 = por %p73, %p74
      %p76 = scmp.ne.s32.totalorder %s68, %s70
      %p77 = scmp.eq.s32.totalorder %s18, 3
      %p78 = por %p76, %p77
      %p79 = scmp.ne.s32.totalorder %s70, %s71
      %p80 = scmp.eq.s32.totalorder %s18, 0
      %p81 = por %p79, %p80
      %p82 = scmp.ne.s32.totalorder %s70, %s71
      %p83 = scmp.eq.s32.totalorder %s19, 3
      %p84 = por %p82, %p83
      %p86 = scmp.ne.s32.totalorder %s71, %s85
      %p87 = scmp.eq.s32.totalorder %s19, 0
      %p88 = por %p86, %p87
      %s90 = sadd.s32 %s89, 1
      %p93 = scmp.eq.s32.totalorder %s13, 3
      %p94 = scmp.ne.s32.totalorder %s89, %s91
      %p95 = scmp.eq.s32.totalorder %s13, 0
      %p96 = por %p94, %p95
      %p97 = scmp.ne.s32.totalorder %s89, %s91
      %p98 = scmp.eq.s32.totalorder %s18, 3
      %p99 = por %p97, %p98
      %p100 = scmp.ne.s32.totalorder %s91, %s92
      %p101 = scmp.eq.s32.totalorder %s18, 0
      %p102 = por %p100, %p101
      %p103 = scmp.ne.s32.totalorder %s91, %s92
      %p104 = scmp.eq.s32.totalorder %s19, 3
      %p105 = por %p103, %p104
      %p107 = scmp.ne.s32.totalorder %s92, %s106
      %p108 = scmp.eq.s32.totalorder %s19, 0
      %p109 = por %p107, %p108
      %s110 = ssub.s32 %s13, %s20
      %p111 = scmp.eq.s32.totalorder %s110, 0
      %s113 = sadd.s32 %s112, 1
      %s114 = scalar_select %p111, %s112, %s113
      %p117 = pneg %p111
      %p118 = scmp.eq.s32.totalorder %s13, 3
      %p119 = por %p117, %p118
      %p120 = scmp.ne.s32.totalorder %s112, %s115
      %p121 = scmp.eq.s32.totalorder %s13, 0
      %p122 = por %p120, %p121
      %p123 = scmp.ne.s32.totalorder %s112, %s115
      %p124 = scmp.eq.s32.totalorder %s18, 3
      %p125 = por %p123, %p124
      %p126 = scmp.ne.s32.totalorder %s115, %s116
      %p127 = scmp.eq.s32.totalorder %s18, 0
      %p128 = por %p126, %p127
      %p129 = scmp.ne.s32.totalorder %s115, %s116
      %p130 = scmp.eq.s32.totalorder %s19, 3
      %p131 = por %p129, %p130
      %p133 = scmp.ne.s32.totalorder %s116, %s132
      %p134 = scmp.eq.s32.totalorder %s19, 0
      %p135 = por %p133, %p134
      %p136 = scmp.le.s32.totalorder 1, %s13
      %p137 = scmp.lt.s32.totalorder %s13, 5
      %p138 = pnand %p136, %p137
      %p139 = pneg %p138
      // Predicated region
      $region9: #{tpu_custom_call.1} parent=5 // pred_check
        _
      $region10: #{tpu_custom_call.1} parent=5 // pred_check_branch
        %141 = sbr.rel (%p138) target = $region12
      $region11: #{tpu_custom_call.1} parent=5 // pred_region
        %s142 = ssub.s32 %s13, 1
        // Predicated region
        $region13: #{tpu_custom_call.1} parent=11 // pred_check
          %p143 = pneg %p60
        $region14: #{tpu_custom_call.1} parent=11 // pred_check_branch
          %145 = sbr.rel (%p143) target = $region16
        $region15: #{tpu_custom_call.1} parent=11 // pred_region
          _
        $region16: #{tpu_custom_call.1} parent=11 // pred_fallthru
          _
        // Predicated region
        $region17: #{tpu_custom_call.1} parent=11 // pred_check
          %p146 = pneg %p81
        $region18: #{tpu_custom_call.1} parent=11 // pred_check_branch
          %148 = sbr.rel (%p146) target = $region20
        $region19: #{tpu_custom_call.1} parent=11 // pred_region
          _
        $region20: #{tpu_custom_call.1} parent=11 // pred_fallthru
          _
        // Predicated region
        $region21: #{tpu_custom_call.1} parent=11 // pred_check
          %p149 = pneg %p102
        $region22: #{tpu_custom_call.1} parent=11 // pred_check_branch
          %151 = sbr.rel (%p149) target = $region24
        $region23: #{tpu_custom_call.1} parent=11 // pred_region
          _
        $region24: #{tpu_custom_call.1} parent=11 // pred_fallthru
          _
      $region12: #{tpu_custom_call.1} parent=5 // pred_fallthru
        _
      %p152 = scmp.lt.s32.totalorder %s13, 4
      // Predicated region
      $region25: #{tpu_custom_call.1} parent=5 // pred_check
        %p153 = pneg %p152
      $region26: #{tpu_custom_call.1} parent=5 // pred_check_branch
        %155 = sbr.rel (%p153) target = $region28
      $region27: #{tpu_custom_call.1} parent=5 // pred_region
        // Predicated region
        $region29: #{tpu_custom_call.1} parent=27 // pred_check
          %p156 = pneg %p33
        $region30: #{tpu_custom_call.1} parent=27 // pred_check_branch
          %158 = sbr.rel (%p156) target = $region32
        $region31: #{tpu_custom_call.1} parent=27 // pred_region
          %s159 = smul.u32 16, %s13
          %p160 = scmp.lt.s32.totalorder %s159, 63
          %s161 = scalar_select %p160, %s159, 63
          %s162 = smul.addr %s161, 4
          %s163 = scalar_lea.vmem %s0, %s162
          %s164 = smul.u32 16, %s13
        $region32: #{tpu_custom_call.1} parent=27 // pred_fallthru
          _
      $region28: #{tpu_custom_call.1} parent=5 // pred_fallthru
        _
      %p165 = scmp.le.s32.totalorder 1, %s13
      %p166 = scmp.lt.s32.totalorder %s13, 5
      %p167 = pnand %p165, %p166
      %p168 = pneg %p167
      // Predicated region
      $region33: #{tpu_custom_call.1} parent=5 // pred_check
        _
      $region34: #{tpu_custom_call.1} parent=5 // pred_check_branch
        %170 = sbr.rel (%p167) target = $region36
      $region35: #{tpu_custom_call.1} parent=5 // pred_region
        %s171 = ssub.s32 %s13, 1
        %s172 = smul.u32 16, %s18
        %p173 = scmp.lt.s32.totalorder %s172, 63
        %s174 = scalar_select %p173, %s172, 63
        %s175 = smul.addr %s174, 4
        %s176 = scalar_lea.vmem %s0, %s175
        %p177 = pneg %p39
        %p178 = pneg %p36
        %p179 = pneg %p60
        %p180 = pneg %p57
        %p181 = pneg %p81
        %p182 = pneg %p78
        %p183 = pneg %p102
        %p184 = pneg %p99
        %p185 = pneg %p128
        %p186 = pneg %p125
        %s187 = sand.u32 %s115, 1
        %s188 = scalar_lea.sflag [#allocation3], %s187
        %s189 = sand.u32 %s115, 1
        %s190 = smul.addr %s189, 64
        %s191 = scalar_lea.vmem [#allocation2], %s190
        %s192 = smul.u32 16, %s18
        %p193 = scmp.lt.s32.totalorder %s192, 63
        %s194 = scalar_select %p193, %s192, 63
        %s195 = smul.addr %s194, 4
        %s196 = scalar_lea.vmem %s0, %s195
        %s197 = smul.u32 16, %s18
        %s198 = smul.u32 16, %s18
        %v200 = vld [vmem:[%s196] sm:$0xf]
        %v201 = vld [vmem:[%s196 + $0x4] sm:$0xf]
        %v202 = vld [vmem:[%s196 + $0x8] sm:$0xf]
        %v203 = vld [vmem:[%s196 + $0xc] sm:$0xf]
        %v204 = vld [vmem:[%s196 + $0x10] sm:$0xf]
        %v205 = vld [vmem:[%s196 + $0x14] sm:$0xf]
        %v206 = vld [vmem:[%s196 + $0x18] sm:$0xf]
        %v207 = vld [vmem:[%s196 + $0x1c] sm:$0xf]
        %v208 = vld [vmem:[%s196 + $0x20] sm:$0xf]
        %v209 = vld [vmem:[%s196 + $0x24] sm:$0xf]
        %v210 = vld [vmem:[%s196 + $0x28] sm:$0xf]
        %v211 = vld [vmem:[%s196 + $0x2c] sm:$0xf]
        %v212 = vld [vmem:[%s196 + $0x30] sm:$0xf]
        %v213 = vld [vmem:[%s196 + $0x34] sm:$0xf]
        %v214 = vld [vmem:[%s196 + $0x38] sm:$0xf]
        %v215 = vld [vmem:[%s196 + $0x3c] sm:$0xf]
        %v216 = vld [vmem:[%s1] sm:$0xf]
        %v217 = vld [vmem:[%s1 + $0x4] sm:$0xf]
        %v218 = vld [vmem:[%s1 + $0x8] sm:$0xf]
        %v219 = vld [vmem:[%s1 + $0xc] sm:$0xf]
        %v220 = vld [vmem:[%s1 + $0x10] sm:$0x3]
        %v237 = vunpack.c.l.b16 %v200
        %v238 = vunpack.c.l.b16 %v201
        %v239 = vunpack.c.l.b16 %v202
        %v240 = vunpack.c.l.b16 %v203
        %v241 = vunpack.c.l.b16 %v204
        %v242 = vunpack.c.l.b16 %v205
        %v243 = vunpack.c.l.b16 %v206
        %v244 = vunpack.c.l.b16 %v207
        %v245 = vunpack.c.l.b16 %v208
        %v246 = vunpack.c.l.b16 %v209
        %v247 = vunpack.c.l.b16 %v210
        %v248 = vunpack.c.l.b16 %v211
        %v249 = vunpack.c.l.b16 %v212
        %v250 = vunpack.c.l.b16 %v213
        %v251 = vunpack.c.l.b16 %v214
        %v252 = vunpack.c.l.b16 %v215
        %v253 = vpack.c.b16 %v238, %v237
        %v254 = vpack.c.b16 %v240, %v239
        %v255 = vpack.c.b16 %v242, %v241
        %v256 = vpack.c.b16 %v244, %v243
        %v257 = vpack.c.b16 %v246, %v245
        %v258 = vpack.c.b16 %v248, %v247
        %v259 = vpack.c.b16 %v250, %v249
        %v260 = vpack.c.b16 %v252, %v251
        %v266 = vunpack.c.l.b16 %v216
        %v267 = vunpack.c.l.b16 %v217
        %v268 = vunpack.c.l.b16 %v218
        %v269 = vunpack.c.l.b16 %v219
        %v270 = vunpack.c.l.b16 %v220
        %v271 = vpack.c.b16 %v267, %v266
        %v272 = vpack.c.b16 %v269, %v268
        %v273 = vpack.c.b16 %v270, %v270
        %vm276 = vcmask 293888
        %v278 = vsel %vm276, %v253, 0
        %v281 = vsel %vm276, %v254, 0
        %v284 = vsel %vm276, %v255, 0
        %v287 = vsel %vm276, %v256, 0
        %v290 = vsel %vm276, %v257, 0
        %v293 = vsel %vm276, %v258, 0
        %v296 = vsel %vm276, %v259, 0
        %v299 = vsel %vm276, %v260, 0
        %vm301 = vcmask 1041408
        %v303 = vsel %vm301, %v273, 0
        %305 = vmatprep.subr.bf16.mxu0 0
        %306 = vmatpush1.bf16.msra.mxu0 %v271
        %307 = vmatprep.subr.bf16.mxu0 0
        %308 = vmatpush1.bf16.msra.mxu0 %v272
        %309 = vmatprep.subr.bf16.mxu0 0
        %310 = vmatpush1.bf16.msra.mxu0 %v303
        %311 = vmatprep.subr.bf16.mxu0 0
        %312 = vmatpush1.bf16.msra.mxu0 0
        %313 = vmatprep.subr.bf16.mxu0 0
        %314 = vmatpush1.bf16.msra.mxu0 0
        %315 = vmatprep.subr.bf16.mxu0 0
        %316 = vmatpush1.bf16.msra.mxu0 0
        %317 = vmatprep.subr.bf16.mxu0 0
        %318 = vmatpush1.bf16.msra.mxu0 0
        %319 = vmatprep.subr.bf16.mxu0 0
        %320 = vmatpush1.bf16.msra.mxu0 0
        %321 = vmatprep.subr.bf16.mxu0 0
        %322 = vmatpush1.bf16.msra.mxu0 0
        %323 = vmatprep.subr.bf16.mxu0 0
        %324 = vmatpush1.bf16.msra.mxu0 0
        %325 = vmatprep.subr.bf16.mxu0 0
        %326 = vmatpush1.bf16.msra.mxu0 0
        %327 = vmatprep.subr.bf16.mxu0 0
        %328 = vmatpush1.bf16.msra.mxu0 0
        %329 = vmatprep.subr.bf16.mxu0 0
        %330 = vmatpush1.bf16.msra.mxu0 0
        %331 = vmatprep.subr.bf16.mxu0 0
        %332 = vmatpush1.bf16.msra.mxu0 0
        %333 = vmatprep.subr.bf16.mxu0 0
        %334 = vmatpush1.bf16.msra.mxu0 0
        %335 = vmatprep.subr.bf16.mxu0 0
        %336 = vmatpush1.bf16.msra.mxu0 0
        %337 = vmatprep.mubr.bf16.mxu0 0
        %338 = vmatmul.mubr.bf16.gmra.mrb[0].mxu0 %v278
        %v339 = vpop.f32.mrb[0].mxu0
        %v340 = vadd.f32 0.0, %v339
        %v341 = vpop.f32.mrb[0].mxu0
        %v342 = vpop.f32.mrb[0].mxu0
        %v343 = vadd.f32 0.0, %v342
        %v344 = vpop.f32.mrb[0].mxu0
        %345 = vmatprep.mubr.bf16.mxu0 0
        %346 = vmatmul.mubr.bf16.gmra.mrb[0].mxu0 %v281
        %v347 = vpop.f32.mrb[0].mxu0
        %v348 = vadd.f32 0.0, %v347
        %v349 = vpop.f32.mrb[0].mxu0
        %v350 = vpop.f32.mrb[0].mxu0
        %v351 = vadd.f32 0.0, %v350
        %v352 = vpop.f32.mrb[0].mxu0
        %353 = vmatprep.mubr.bf16.mxu0 0
        %354 = vmatmul.mubr.bf16.gmra.mrb[0].mxu0 %v284
        %v355 = vpop.f32.mrb[0].mxu0
        %v356 = vadd.f32 0.0, %v355
        %v357 = vpop.f32.mrb[0].mxu0
        %v358 = vpop.f32.mrb[0].mxu0
        %v359 = vadd.f32 0.0, %v358
        %v360 = vpop.f32.mrb[0].mxu0
        %361 = vmatprep.mubr.bf16.mxu0 0
        %362 = vmatmul.mubr.bf16.gmra.mrb[0].mxu0 %v287
        %v363 = vpop.f32.mrb[0].mxu0
        %v364 = vadd.f32 0.0, %v363
        %v365 = vpop.f32.mrb[0].mxu0
        %v366 = vpop.f32.mrb[0].mxu0
        %v367 = vadd.f32 0.0, %v366
        %v368 = vpop.f32.mrb[0].mxu0
        %369 = vmatprep.mubr.bf16.mxu0 0
        %370 = vmatmul.mubr.bf16.gmra.mrb[0].mxu0 %v290
        %v371 = vpop.f32.mrb[0].mxu0
        %v372 = vadd.f32 0.0, %v371
        %v373 = vpop.f32.mrb[0].mxu0
        %v374 = vpop.f32.mrb[0].mxu0
        %v375 = vadd.f32 0.0, %v374
        %v376 = vpop.f32.mrb[0].mxu0
        %377 = vmatprep.mubr.bf16.mxu0 0
        %378 = vmatmul.mubr.bf16.gmra.mrb[0].mxu0 %v293
        %v379 = vpop.f32.mrb[0].mxu0
        %v380 = vadd.f32 0.0, %v379
        %v381 = vpop.f32.mrb[0].mxu0
        %v382 = vpop.f32.mrb[0].mxu0
        %v383 = vadd.f32 0.0, %v382
        %v384 = vpop.f32.mrb[0].mxu0
        %385 = vmatprep.mubr.bf16.mxu0 0
        %386 = vmatmul.mubr.bf16.gmra.mrb[0].mxu0 %v296
        %v387 = vpop.f32.mrb[0].mxu0
        %v388 = vadd.f32 0.0, %v387
        %v389 = vpop.f32.mrb[0].mxu0
        %v390 = vpop.f32.mrb[0].mxu0
        %v391 = vadd.f32 0.0, %v390
        %v392 = vpop.f32.mrb[0].mxu0
        %393 = vmatprep.mubr.bf16.mxu0 0
        %394 = vmatmul.mubr.bf16.gmra.mrb[0].mxu0 %v299
        %v395 = vpop.f32.mrb[0].mxu0
        %v396 = vadd.f32 0.0, %v395
        %v397 = vpop.f32.mrb[0].mxu0
        %v398 = vpop.f32.mrb[0].mxu0
        %v399 = vadd.f32 0.0, %v398
        %v400 = vpop.f32.mrb[0].mxu0
        %401 = vdwg.mxu0
        %v402 = vld [vmem:[%s2] sm:$0x1]
        %v404 = vlaneseq
        %v405 = vshrl.u32 %v404, 7
        %v406 = vsub.s32 0, %v405
        %v407 = vrot.slane %v402, %v406
        %v409 = vmul.f32 %v340, %v407
        %v410 = vmul.f32 %v343, %v407
        %v411 = vmul.f32 %v348, %v407
        %v412 = vmul.f32 %v351, %v407
        %v413 = vmul.f32 %v356, %v407
        %v414 = vmul.f32 %v359, %v407
        %v415 = vmul.f32 %v364, %v407
        %v416 = vmul.f32 %v367, %v407
        %v417 = vmul.f32 %v372, %v407
        %v418 = vmul.f32 %v375, %v407
        %v419 = vmul.f32 %v380, %v407
        %v420 = vmul.f32 %v383, %v407
        %v421 = vmul.f32 %v388, %v407
        %v422 = vmul.f32 %v391, %v407
        %v423 = vmul.f32 %v396, %v407
        %v424 = vmul.f32 %v399, %v407
        %v425 = vld [vmem:[%s3] sm:$0x1]
        %v427 = vlaneseq
        %v428 = vshrl.u32 %v427, 7
        %v429 = vsub.s32 0, %v428
        %v430 = vrot.slane %v425, %v429
        %v432 = vadd.f32 %v409, %v430
        %v433 = vadd.f32 %v410, %v430
        %v434 = vadd.f32 %v411, %v430
        %v435 = vadd.f32 %v412, %v430
        %v436 = vadd.f32 %v413, %v430
        %v437 = vadd.f32 %v414, %v430
        %v438 = vadd.f32 %v415, %v430
        %v439 = vadd.f32 %v416, %v430
        %v440 = vadd.f32 %v417, %v430
        %v441 = vadd.f32 %v418, %v430
        %v442 = vadd.f32 %v419, %v430
        %v443 = vadd.f32 %v420, %v430
        %v444 = vadd.f32 %v421, %v430
        %v445 = vadd.f32 %v422, %v430
        %v446 = vadd.f32 %v423, %v430
        %v447 = vadd.f32 %v424, %v430
        %v448 = vmax.f32 %v432, 0.0
        %v449 = vmax.f32 %v433, 0.0
        %v450 = vmax.f32 %v434, 0.0
        %v451 = vmax.f32 %v435, 0.0
        %v452 = vmax.f32 %v436, 0.0
        %v453 = vmax.f32 %v437, 0.0
        %v454 = vmax.f32 %v438, 0.0
        %v455 = vmax.f32 %v439, 0.0
        %v456 = vmax.f32 %v440, 0.0
        %v457 = vmax.f32 %v441, 0.0
        %v458 = vmax.f32 %v442, 0.0
        %v459 = vmax.f32 %v443, 0.0
        %v460 = vmax.f32 %v444, 0.0
        %v461 = vmax.f32 %v445, 0.0
        %v462 = vmax.f32 %v446, 0.0
        %v463 = vmax.f32 %v447, 0.0
        %v464 = vpack.c.bf16 %v449, %v448
        %v465 = vpack.c.bf16 %v451, %v450
        %v466 = vpack.c.bf16 %v453, %v452
        %v467 = vpack.c.bf16 %v455, %v454
        %v468 = vpack.c.bf16 %v457, %v456
        %v469 = vpack.c.bf16 %v459, %v458
        %v470 = vpack.c.bf16 %v461, %v460
        %v471 = vpack.c.bf16 %v463, %v462
        %v480 = vunpack.c.l.b16 %v464
        %v481 = vunpack.c.h.b16 %v464
        %v482 = vunpack.c.l.b16 %v465
        %v483 = vunpack.c.h.b16 %v465
        %v484 = vunpack.c.l.b16 %v466
        %v485 = vunpack.c.h.b16 %v466
        %v486 = vunpack.c.l.b16 %v467
        %v487 = vunpack.c.h.b16 %v467
        %v488 = vunpack.c.l.b16 %v468
        %v489 = vunpack.c.h.b16 %v468
        %v490 = vunpack.c.l.b16 %v469
        %v491 = vunpack.c.h.b16 %v469
        %v492 = vunpack.c.l.b16 %v470
        %v493 = vunpack.c.h.b16 %v470
        %v494 = vunpack.c.l.b16 %v471
        %v495 = vunpack.c.h.b16 %v471
        %v496 = vpack.c.b16 %v480, %v480
        %v497 = vpack.c.b16 %v481, %v481
        %v498 = vpack.c.b16 %v482, %v482
        %v499 = vpack.c.b16 %v483, %v483
        %v500 = vpack.c.b16 %v484, %v484
        %v501 = vpack.c.b16 %v485, %v485
        %v502 = vpack.c.b16 %v486, %v486
        %v503 = vpack.c.b16 %v487, %v487
        %v504 = vpack.c.b16 %v488, %v488
        %v505 = vpack.c.b16 %v489, %v489
        %v506 = vpack.c.b16 %v490, %v490
        %v507 = vpack.c.b16 %v491, %v491
        %v508 = vpack.c.b16 %v492, %v492
        %v509 = vpack.c.b16 %v493, %v493
        %v510 = vpack.c.b16 %v494, %v494
        %v511 = vpack.c.b16 %v495, %v495
        %528 = vst [vmem:[%s191] sm:$0xf] %v496
        %529 = vst [vmem:[%s191 + $0x4] sm:$0xf] %v497
        %530 = vst [vmem:[%s191 + $0x8] sm:$0xf] %v498
        %531 = vst [vmem:[%s191 + $0xc] sm:$0xf] %v499
        %532 = vst [vmem:[%s191 + $0x10] sm:$0xf] %v500
        %533 = vst [vmem:[%s191 + $0x14] sm:$0xf] %v501
        %534 = vst [vmem:[%s191 + $0x18] sm:$0xf] %v502
        %535 = vst [vmem:[%s191 + $0x1c] sm:$0xf] %v503
        %536 = vst [vmem:[%s191 + $0x20] sm:$0xf] %v504
        %537 = vst [vmem:[%s191 + $0x24] sm:$0xf] %v505
        %538 = vst [vmem:[%s191 + $0x28] sm:$0xf] %v506
        %539 = vst [vmem:[%s191 + $0x2c] sm:$0xf] %v507
        %540 = vst [vmem:[%s191 + $0x30] sm:$0xf] %v508
        %541 = vst [vmem:[%s191 + $0x34] sm:$0xf] %v509
        %542 = vst [vmem:[%s191 + $0x38] sm:$0xf] %v510
        %543 = vst [vmem:[%s191 + $0x3c] sm:$0xf] %v511
        %s544 = sand.u32 %s115, 1
        %s545 = scalar_lea.sflag [#allocation3], %s544
        %s546 = sand.u32 %s115, 1
        %s547 = smul.addr %s546, 64
        %s548 = scalar_lea.vmem [#allocation2], %s547
        // Predicated region
        $region37: #{tpu_custom_call.1} parent=35 // pred_check
          %p549 = pneg %p125
        $region38: #{tpu_custom_call.1} parent=35 // pred_check_branch
          %551 = sbr.rel (%p549) target = $region40
        $region39: #{tpu_custom_call.1} parent=35 // pred_region
          %s552 = smul.u32 16, %s18
          %s554 = ssub.s32 1024, 1024
          %555 = vsyncadd %s545, %s554
          %s556 = smul.addr %s552, 64
          %s557 = scalar_lea.hbm %s4, %s556
          %s558 = sshll.u32 %s548, 4
          %s559 = int_to_ptr.vmem [resolvable:$true] %s558
          %564 = dma.vmem_to_hbm [thread:$0]  %s559, 1024, %s557, %s545, 64, 64, 4
        $region40: #{tpu_custom_call.1} parent=35 // pred_fallthru
          _
      $region36: #{tpu_custom_call.1} parent=5 // pred_fallthru
        _
      %p565 = scmp.le.s32.totalorder 2, %s13
      // Predicated region
      $region41: #{tpu_custom_call.1} parent=5 // pred_check
        %p566 = pneg %p565
      $region42: #{tpu_custom_call.1} parent=5 // pred_check_branch
        %568 = sbr.rel (%p566) target = $region44
      $region43: #{tpu_custom_call.1} parent=5 // pred_region
        %s569 = ssub.s32 %s13, 2
        // Predicated region
        $region45: #{tpu_custom_call.1} parent=43 // pred_check
          %p570 = pneg %p131
        $region46: #{tpu_custom_call.1} parent=43 // pred_check_branch
          %572 = sbr.rel (%p570) target = $region48
        $region47: #{tpu_custom_call.1} parent=43 // pred_region
          %s573 = sand.u32 %s116, 1
          %s574 = scalar_lea.sflag [#allocation3], %s573
          %s575 = sand.u32 %s116, 1
          %s576 = smul.addr %s575, 64
          %s577 = scalar_lea.vmem [#allocation2], %s576
          %578 = dma.done %s574, 1024
        $region48: #{tpu_custom_call.1} parent=43 // pred_fallthru
          _
      $region44: #{tpu_custom_call.1} parent=5 // pred_fallthru
        _
    $region6: #{tpu_custom_call.1} parent=1 // loop_footer
      %s17 = sadd.s32 1, %s13
    $region7: #{tpu_custom_call.1} parent=1 // loop_footer_branch
      %12 = sbr.rel target = $region3
    $region8: #{tpu_custom_call.1} parent=1 // loop_exit
      _
    %579 = vsyncpa [#allocation3], 1
    %s580 = scalar_lea.sflag [#allocation3], 1
    %581 = vsyncpa %s580, 1

</llo_original>
